<compile_context>
chip_gen: v7x
topology: tpu7x:2x2x1
jax: 0.10.0
libtpu: 0.0.40
codegen_flags: <defaults>
</compile_context>

<pallas_src>
import functools
import math

import jax
import jax.numpy as jnp
from jax.experimental import pallas as pl
from jax.experimental.pallas import tpu as pltpu

_LOG_EPS = math.log(1e-6)  # log of the zero-replacement epsilon


def _concat_ce_kernel(x_ref, o_ref, acc_ref, *, num_classes: int,
                      batch_size: int, block_rows: int):
    p = pl.program_id(0)                  # core / parallel index
    j = pl.program_id(1)                  # tile index within this core's sweep
    tiles_per_core = pl.num_programs(1)
    tile_idx = p * tiles_per_core + j     # global tile index (may be a clamped dup)

    @pl.when(j == 0)
    def _init():
        acc_ref[...] = jnp.zeros_like(acc_ref)

    # (TB, 2*nc) tile, streamed in native dtype, compute in f32.
    x = x_ref[...].astype(jnp.float32)

    # Joint softmax pieces over the class (lane) axis.
    m = jnp.max(x, axis=-1, keepdims=True)
    sh = x - m
    e = jnp.exp(sh)                                   # EUP
    denom = jnp.sum(e, axis=-1, keepdims=True)        # (TB, 1)
    inv = pl.reciprocal(denom, approx=False)          # lane-sparse; exact is ~free
    logd = jnp.log(denom)                             # (TB, 1), one log per row

    # process_zero_values: prob == 0 exactly iff exp underflowed to 0 on TPU.
    zero = e == jnp.float32(0.0)
    lg = jnp.where(zero, jnp.float32(_LOG_EPS), sh - logd)   # adjusted log prob
    w = jnp.where(zero, jnp.float32(1e-6), e * inv)          # adjusted prob weight

    nc = num_classes
    # Cross terms: sum_c [ log(p_s) p_t + log(p_t) p_s ]  per row.
    cross = lg[:, :nc] * w[:, nc:] + lg[:, nc:] * w[:, :nc]  # (TB, nc)
    row = jnp.sum(cross, axis=-1, keepdims=True)             # (TB, 1)

    full_tiles = batch_size // block_rows  # static: tiles that are fully valid

    @pl.when(tile_idx < full_tiles)
    def _accumulate_full():                # steady state: no masking work at all
        acc_ref[...] += jnp.sum(row, axis=0, keepdims=True)

    @pl.when(tile_idx >= full_tiles)
    def _accumulate_tail():                # partial last tile and/or duplicate tiles
        row_ids = tile_idx * block_rows + jax.lax.broadcasted_iota(
            jnp.int32, (block_rows, 1), 0)
        masked = jnp.where(row_ids < batch_size, row, jnp.float32(0.0))
        acc_ref[...] += jnp.sum(masked, axis=0, keepdims=True)

    @pl.when(j == tiles_per_core - 1)
    def _finalize():
        # loss contribution of this core's rows: -0.5/B * sum_rows(cross)
        o_ref[...] = (acc_ref[...] * jnp.float32(-0.5 / batch_size)).reshape(1, 1, 1)


def concatenated_ce_loss(x: jax.Array, num_classes: int = 31,
                         block_rows: int = 8192, num_cores: int = 2) -> jax.Array:
    """x: (B, 2*num_classes) logits (any float dtype). Returns scalar f32 loss."""
    B, C = x.shape
    assert C == 2 * num_classes, f"expected C == 2*num_classes, got {C} vs {2 * num_classes}"

    # Batch tile: whole batch if small (block == full dims is always legal),
    # otherwise a multiple-of-8 row tile.
    if B <= block_rows:
        tb = B
    else:
        assert block_rows % 8 == 0
        tb = block_rows

    num_tiles = pl.cdiv(B, tb)
    tiles_per_core = pl.cdiv(num_tiles, num_cores)

    # Input tile index, clamped so duplicate tiles (when num_cores*tiles_per_core
    # > num_tiles) re-read the last real block; their contribution is masked to 0.
    def x_map(cp, jt):
        return (jnp.minimum(cp * tiles_per_core + jt, num_tiles - 1), 0)

    # Scoped VMEM: ~2 input buffers + O(10) f32 (tb, C) temporaries.  Keep below
    # v7x's 64 MiB physical VMEM at the default tile size; raise block_rows (and
    # this cap) only on v5e/v6e which have 128 MiB.
    vmem_limit = int(min(96 * 2**20, max(32 * 2**20, 18 * tb * C * 4)))

    kernel = functools.partial(_concat_ce_kernel, num_classes=num_classes,
                               batch_size=B, block_rows=tb)

    out = pl.pallas_call(
        kernel,
        out_shape=jax.ShapeDtypeStruct((num_cores, 1, 1), jnp.float32),
        grid_spec=pltpu.PrefetchScalarGridSpec(
            num_scalar_prefetch=0,
            grid=(num_cores, tiles_per_core),
            in_specs=[pl.BlockSpec((tb, C), x_map)],
            out_specs=pl.BlockSpec((1, 1, 1), lambda cp, jt: (cp, 0, 0)),
            scratch_shapes=[pltpu.VMEM((1, 1), jnp.float32)],
        ),
        compiler_params=pltpu.CompilerParams(
            dimension_semantics=("parallel", "arbitrary"),
            vmem_limit_bytes=vmem_limit),
    )(x)   # native dtype streamed; cast to f32 inside the kernel

    return out[:, 0, 0].sum()   # sum the per-core partial losses


def _reference(x: jax.Array, num_classes: int) -> jax.Array:
    prob = jax.nn.softmax(x.astype(jnp.float32), axis=1)
    ps = prob[:, :num_classes]
    pt = prob[:, num_classes:]
    ps = jnp.where(ps == 0.0, ps + 1e-6, ps)
    pt = jnp.where(pt == 0.0, pt + 1e-6, pt)
    t1 = jnp.mean(jnp.sum(jnp.log(ps) * pt, axis=1))
    t2 = jnp.mean(jnp.sum(jnp.log(pt) * ps, axis=1))
    return 0.5 * (-t1 - t2)


if __name__ == "__main__":
    num_classes = 31
    key = jax.random.PRNGKey(0)
    k1, k2 = jax.random.split(key)

    # 1) Small single-tile case (f32); also exercises the clamped duplicate tile
    #    on the second "core" of the parallel axis (it must contribute 0).
    B = 8
    x = jax.random.normal(k1, (B, 2 * num_classes), dtype=jnp.float32)
    loss = concatenated_ce_loss(x, num_classes=num_classes)
    jax.block_until_ready(loss)
    ref = _reference(x, num_classes)
    assert jnp.allclose(loss, ref, rtol=1e-5, atol=1e-5), (loss, ref)

    # 2) Multi-tile case with a partial last tile: B=200, TB=64 -> 4 tiles split
    #    2+2 across the parallel axis, last tile has 8 valid rows (tail masking).
    B2 = 200
    x2 = jax.random.normal(k2, (B2, 2 * num_classes), dtype=jnp.float32)
    loss2 = concatenated_ce_loss(x2, num_classes=num_classes, block_rows=64)
    jax.block_until_ready(loss2)
    ref2 = _reference(x2, num_classes)
    assert jnp.allclose(loss2, ref2, rtol=1e-5, atol=1e-5), (loss2, ref2)

    # 3) Native bf16 input streamed without a wrapper-side upcast.
    x3 = x.astype(jnp.bfloat16)
    loss3 = concatenated_ce_loss(x3, num_classes=num_classes)
    jax.block_until_ready(loss3)
    ref3 = _reference(x3, num_classes)
    assert jnp.allclose(loss3, ref3, rtol=1e-4, atol=1e-4), (loss3, ref3)

    print("KERNEL_OK")
</pallas_src>

<mosaic_0001>
module attributes {stable_mosaic.version = 11 : i64} {
  func.func @_concat_ce_kernel(%arg0: i32, %arg1: i32, %arg2: memref<8x62xf32, #tpu.memory_space<vmem>>, %arg3: memref<1x1x1xf32, #tpu.memory_space<vmem>>, %arg4: memref<1x1xf32, #tpu.memory_space<vmem>>) attributes {dimension_semantics = [#tpu.dimension_semantics<parallel>, #tpu.dimension_semantics<arbitrary>], iteration_bounds = array<i64: 2, 1>, scalar_prefetch = 0 : i64, scratch_operands = 1 : i64, tpu.core_type = #tpu.core_type<tc>, window_params = [{transform_indices = @transform_0, window_bounds = array<i64: 8, 62>}, {transform_indices = @transform_1, window_bounds = array<i64: 1, 1, 1>}]} {
    %c1_i32 = arith.constant 1 : i32
    %0 = arith.muli %arg0, %c1_i32 : i32
    %1 = arith.addi %0, %arg1 : i32
    %c0_i32 = arith.constant 0 : i32
    %2 = arith.cmpi eq, %arg1, %c0_i32 : i32
    %3 = arith.extui %2 : i1 to i32
    %c0_i32_0 = arith.constant 0 : i32
    %4 = arith.cmpi ne, %3, %c0_i32_0 : i32
    scf.if %4 {
      %cst_13 = arith.constant 0.000000e+00 : f32
      %43 = vector.broadcast %cst_13 : f32 to vector<1x1xf32>
      %c0_14 = arith.constant 0 : index
      %c0_15 = arith.constant 0 : index
      %44 = vector.load %arg4[%c0_14, %c0_15] : memref<1x1xf32, #tpu.memory_space<vmem>>, vector<1x1xf32>
      tpu.vector_store %arg4[%c0_14, %c0_15], %43 {strides = array<i32>} : memref<1x1xf32, #tpu.memory_space<vmem>>, vector<1x1xf32>,
    } else {
    }
    %c0 = arith.constant 0 : index
    %c0_1 = arith.constant 0 : index
    %5 = vector.load %arg2[%c0, %c0_1] : memref<8x62xf32, #tpu.memory_space<vmem>>, vector<8x62xf32>
    %cst = arith.constant dense<0xFF800000> : vector<8xf32>
    %6 = vector.multi_reduction <maximumf>, %5, %cst [1] : vector<8x62xf32> to vector<8xf32>
    %7 = vector.shape_cast %6 : vector<8xf32> to vector<8x1xf32>
    %8 = vector.broadcast %7 : vector<8x1xf32> to vector<8x62xf32>
    %9 = arith.subf %5, %8 : vector<8x62xf32>
    %10 = math.exp %9 : vector<8x62xf32>
    %cst_2 = arith.constant dense<0.000000e+00> : vector<8xf32>
    %11 = vector.multi_reduction <add>, %10, %cst_2 [1] : vector<8x62xf32> to vector<8xf32>
    %12 = vector.shape_cast %11 : vector<8xf32> to vector<8x1xf32>
    %13 = tpu.reciprocal %12 : vector<8x1xf32> -> vector<8x1xf32>
    %14 = math.log %12 : vector<8x1xf32>
    %cst_3 = arith.constant 0.000000e+00 : f32
    %15 = vector.broadcast %cst_3 : f32 to vector<8x62xf32>
    %16 = arith.cmpf oeq, %10, %15 : vector<8x62xf32>
    %17 = vector.broadcast %14 : vector<8x1xf32> to vector<8x62xf32>
    %18 = arith.subf %9, %17 : vector<8x62xf32>
    %cst_4 = arith.constant -13.8155107 : f32
    %19 = vector.broadcast %cst_4 : f32 to vector<8x62xf32>
    %20 = arith.select %16, %19, %18 : vector<8x62xi1>, vector<8x62xf32>
    %21 = vector.broadcast %13 : vector<8x1xf32> to vector<8x62xf32>
    %22 = arith.mulf %10, %21 : vector<8x62xf32>
    %cst_5 = arith.constant 9.99999997E-7 : f32
    %23 = vector.broadcast %cst_5 : f32 to vector<8x62xf32>
    %24 = arith.select %16, %23, %22 : vector<8x62xi1>, vector<8x62xf32>
    %25 = vector.extract_strided_slice %20 {offsets = [0, 0], sizes = [8, 31], strides = [1, 1]} : vector<8x62xf32> to vector<8x31xf32>
    %26 = vector.extract_strided_slice %24 {offsets = [0, 31], sizes = [8, 31], strides = [1, 1]} : vector<8x62xf32> to vector<8x31xf32>
    %27 = arith.mulf %25, %26 : vector<8x31xf32>
    %28 = vector.extract_strided_slice %20 {offsets = [0, 31], sizes = [8, 31], strides = [1, 1]} : vector<8x62xf32> to vector<8x31xf32>
    %29 = vector.extract_strided_slice %24 {offsets = [0, 0], sizes = [8, 31], strides = [1, 1]} : vector<8x62xf32> to vector<8x31xf32>
    %30 = arith.mulf %28, %29 : vector<8x31xf32>
    %31 = arith.addf %27, %30 : vector<8x31xf32>
    %cst_6 = arith.constant dense<0.000000e+00> : vector<8xf32>
    %32 = vector.multi_reduction <add>, %31, %cst_6 [1] : vector<8x31xf32> to vector<8xf32>
    %33 = vector.shape_cast %32 : vector<8xf32> to vector<8x1xf32>
    %c1_i32_7 = arith.constant 1 : i32
    %34 = arith.cmpi slt, %1, %c1_i32_7 : i32
    %35 = arith.extui %34 : i1 to i32
    %c0_i32_8 = arith.constant 0 : i32
    %36 = arith.cmpi ne, %35, %c0_i32_8 : i32
    scf.if %36 {
      %c0_13 = arith.constant 0 : index
      %c0_14 = arith.constant 0 : index
      %43 = vector.load %arg4[%c0_13, %c0_14] : memref<1x1xf32, #tpu.memory_space<vmem>>, vector<1x1xf32>
      %cst_15 = arith.constant dense<0.000000e+00> : vector<1xf32>
      %44 = vector.multi_reduction <add>, %33, %cst_15 [0] : vector<8x1xf32> to vector<1xf32>
      %45 = vector.shape_cast %44 : vector<1xf32> to vector<1x1xf32>
      %46 = arith.addf %43, %45 : vector<1x1xf32>
      %c0_16 = arith.constant 0 : index
      %c0_17 = arith.constant 0 : index
      %47 = vector.load %arg4[%c0_16, %c0_17] : memref<1x1xf32, #tpu.memory_space<vmem>>, vector<1x1xf32>
      tpu.vector_store %arg4[%c0_16, %c0_17], %46 {strides = array<i32>} : memref<1x1xf32, #tpu.memory_space<vmem>>, vector<1x1xf32>,
    } else {
    }
    %c1_i32_9 = arith.constant 1 : i32
    %37 = arith.cmpi sge, %1, %c1_i32_9 : i32
    %38 = arith.extui %37 : i1 to i32
    %c0_i32_10 = arith.constant 0 : i32
    %39 = arith.cmpi ne, %38, %c0_i32_10 : i32
    scf.if %39 {
      %c8_i32 = arith.constant 8 : i32
      %43 = arith.muli %1, %c8_i32 : i32
      %44 = tpu.iota {dimensions = array<i32: 0>} : vector<8x1xi32>
      %45 = vector.broadcast %43 : i32 to vector<8x1xi32>
      %46 = arith.addi %45, %44 : vector<8x1xi32>
      %c8_i32_13 = arith.constant 8 : i32
      %47 = vector.broadcast %c8_i32_13 : i32 to vector<8x1xi32>
      %48 = arith.cmpi slt, %46, %47 : vector<8x1xi32>
      %cst_14 = arith.constant 0.000000e+00 : f32
      %49 = vector.broadcast %cst_14 : f32 to vector<8x1xf32>
      %50 = arith.select %48, %33, %49 : vector<8x1xi1>, vector<8x1xf32>
      %c0_15 = arith.constant 0 : index
      %c0_16 = arith.constant 0 : index
      %51 = vector.load %arg4[%c0_15, %c0_16] : memref<1x1xf32, #tpu.memory_space<vmem>>, vector<1x1xf32>
      %cst_17 = arith.constant dense<0.000000e+00> : vector<1xf32>
      %52 = vector.multi_reduction <add>, %50, %cst_17 [0] : vector<8x1xf32> to vector<1xf32>
      %53 = vector.shape_cast %52 : vector<1xf32> to vector<1x1xf32>
      %54 = arith.addf %51, %53 : vector<1x1xf32>
      %c0_18 = arith.constant 0 : index
      %c0_19 = arith.constant 0 : index
      %55 = vector.load %arg4[%c0_18, %c0_19] : memref<1x1xf32, #tpu.memory_space<vmem>>, vector<1x1xf32>
      tpu.vector_store %arg4[%c0_18, %c0_19], %54 {strides = array<i32>} : memref<1x1xf32, #tpu.memory_space<vmem>>, vector<1x1xf32>,
    } else {
    }
    %c0_i32_11 = arith.constant 0 : i32
    %40 = arith.cmpi eq, %arg1, %c0_i32_11 : i32
    %41 = arith.extui %40 : i1 to i32
    %c0_i32_12 = arith.constant 0 : i32
    %42 = arith.cmpi ne, %41, %c0_i32_12 : i32
    scf.if %42 {
      %c0_13 = arith.constant 0 : index
      %c0_14 = arith.constant 0 : index
      %43 = vector.load %arg4[%c0_13, %c0_14] : memref<1x1xf32, #tpu.memory_space<vmem>>, vector<1x1xf32>
      %cst_15 = arith.constant -6.250000e-02 : f32
      %44 = vector.broadcast %cst_15 : f32 to vector<1x1xf32>
      %45 = arith.mulf %43, %44 : vector<1x1xf32>
      %46 = vector.shape_cast %45 : vector<1x1xf32> to vector<1x1x1xf32>
      %c0_16 = arith.constant 0 : index
      %c0_17 = arith.constant 0 : index
      %c0_18 = arith.constant 0 : index
      %47 = vector.load %arg3[%c0_16, %c0_17, %c0_18] : memref<1x1x1xf32, #tpu.memory_space<vmem>>, vector<1x1x1xf32>
      tpu.vector_store %arg3[%c0_16, %c0_17, %c0_18], %46 {strides = array<i32>} : memref<1x1x1xf32, #tpu.memory_space<vmem>>, vector<1x1x1xf32>,
    } else {
    }
    return
  }
  func.func @transform_0(%arg0: i32, %arg1: i32) -> (i32, i32) {
    %c1_i32 = arith.constant 1 : i32
    %0 = arith.muli %arg0, %c1_i32 : i32
    %1 = arith.addi %0, %arg1 : i32
    %c0_i32 = arith.constant 0 : i32
    %2 = arith.minsi %1, %c0_i32 : i32
    %c0_i32_0 = arith.constant 0 : i32
    %c0_i32_1 = arith.constant 0 : i32
    return %2, %c0_i32_0 : i32, i32
  }
  func.func @transform_1(%arg0: i32, %arg1: i32) -> (i32, i32, i32) {
    %c0_i32 = arith.constant 0 : i32
    %c0_i32_0 = arith.constant 0 : i32
    %c0_i32_1 = arith.constant 0 : i32
    return %arg0, %c0_i32, %c0_i32_0 : i32, i32, i32
  }
}

</mosaic_0001>

<llo_original>
// kernel: tpu_custom_call.1
$region0: #{tpu_custom_call.1}
  #allocation0 [shape = 'u32[]', space=smem, size = 0x4, offset = 0x4, fixed_abs, tag = 'smem constant byte address 0x4 - core index']
  #allocation1 [shape = 'u32[144,128]{1,0:T(1,128)}', space=vmem, size = 0x12000, scoped, tag = 'internal scratch']
  #allocation2 [shape = 'f32[1,1]{1,0:T(1,128)}', space=vmem, size = 0x200, scoped, tag = 'scratch operand']
  %s0 = inlined_call_operand.hbm [shape: f32[8,62], index: 0, kind: input, shape index: {}]
  %s1 = inlined_call_operand.vmem [shape: f32[2,1,1], index: 1, kind: output, shape index: {}]
  %s2 = sld [smem:[#allocation0]]
  $region57: #{tpu_custom_call.1} parent=0
    _
  %s4 = ssub.s32 1, %s2
  %s5 = scalar_select 0, %s4, %s2
  $region1: #{tpu_custom_call.1} parent=0
    #allocation3 [shape = 'u8[8192]{0}', space=vmem, size = 0x2000, scoped, tag = 'input window, operand 0']
    #allocation4 [shape = 's32[2]{0}', space=sflag, size = 0x8, scoped, tag = 'scoped memory for tpu_custom_call.1']
    %6 = vsyncpa [#allocation4], 0
    %s7 = scalar_lea.sflag [#allocation4], 1
    %8 = vsyncpa %s7, 0
    loop: start=0, step=1, limit=4
    $region2: #{tpu_custom_call.1} parent=1 // loop_pre_header
      _
    $region3: #{tpu_custom_call.1} parent=1 // loop_header
      %s10 = sphi 0, %s14
      %p11 = scmp.ge.s32.totalorder %s10, 4
      %s17 = sphi 0, %s29
      %s18 = sphi 0, %s25
      %s19 = sphi 0, %s17
      %s20 = sphi 0, %s18
      %s21 = sphi 0, %s19
      %s22 = sphi 0, %s20
      %s38 = sphi 0, %s40
      %s41 = sphi 0, %s38
      %s42 = sphi 0, %s41
      %s58 = sphi 0, %s42
      %s64 = sphi 0, %s66
      %s67 = sphi 0, %s64
      %s68 = sphi 0, %s67
      %s84 = sphi 0, %s68
    $region4: #{tpu_custom_call.1} parent=1 // loop_header_branch
      %13 = sbr.rel (%p11) target = $region8
    $region5: #{tpu_custom_call.1} parent=1 // loop_body
      %s15 = ssub.s32 %s10, 1
      %s16 = ssub.s32 %s10, 2
      %s23 = sadd.s32 1, %s18
      %p24 = scmp.ge.s32.totalorder %s23, 1
      %s25 = scalar_select %p24, 0, %s23
      %s26 = sadd.s32 1, %s17
      %s27 = scalar_select %p24, %s26, %s17
      %p28 = scmp.ge.s32.totalorder %s27, 2
      %s29 = scalar_select %p28, 0, %s27
      %s30 = sadd.s32 %s17, %s18
      %p31 = scmp.lt.s32.totalorder %s30, 0
      %s32 = scalar_select %p31, %s30, 0
      %s33 = sadd.s32 %s29, %s25
      %p34 = scmp.lt.s32.totalorder %s33, 0
      %s35 = scalar_select %p34, %s33, 0
      %s36 = ssub.s32 %s32, %s35
      %p37 = scmp.eq.s32.totalorder %s36, 0
      %s39 = sadd.s32 %s38, 1
      %s40 = scalar_select %p37, %s38, %s39
      %p43 = pneg %p37
      %p44 = scmp.eq.s32.totalorder %s10, 1
      %p45 = por %p43, %p44
      %p46 = scmp.ne.s32.totalorder %s38, %s41
      %p47 = scmp.eq.s32.totalorder %s10, 0
      %p48 = por %p46, %p47
      %p49 = scmp.ne.s32.totalorder %s38, %s41
      %p50 = scmp.eq.s32.totalorder %s15, 1
      %p51 = por %p49, %p50
      %p52 = scmp.ne.s32.totalorder %s41, %s42
      %p53 = scmp.eq.s32.totalorder %s15, 0
      %p54 = por %p52, %p53
      %p55 = scmp.ne.s32.totalorder %s41, %s42
      %p56 = scmp.eq.s32.totalorder %s16, 1
      %p57 = por %p55, %p56
      %p59 = scmp.ne.s32.totalorder %s42, %s58
      %p60 = scmp.eq.s32.totalorder %s16, 0
      %p61 = por %p59, %p60
      %s62 = ssub.s32 %s17, %s29
      %p63 = scmp.eq.s32.totalorder %s62, 0
      %s65 = sadd.s32 %s64, 1
      %s66 = scalar_select %p63, %s64, %s65
      %p69 = pneg %p63
      %p70 = scmp.eq.s32.totalorder %s10, 1
      %p71 = por %p69, %p70
      %p72 = scmp.ne.s32.totalorder %s64, %s67
      %p73 = scmp.eq.s32.totalorder %s10, 0
      %p74 = por %p72, %p73
      %p75 = scmp.ne.s32.totalorder %s64, %s67
      %p76 = scmp.eq.s32.totalorder %s15, 1
      %p77 = por %p75, %p76
      %p78 = scmp.ne.s32.totalorder %s67, %s68
      %p79 = scmp.eq.s32.totalorder %s15, 0
      %p80 = por %p78, %p79
      %p81 = scmp.ne.s32.totalorder %s67, %s68
      %p82 = scmp.eq.s32.totalorder %s16, 1
      %p83 = por %p81, %p82
      %p85 = scmp.ne.s32.totalorder %s68, %s84
      %p86 = scmp.eq.s32.totalorder %s16, 0
      %p87 = por %p85, %p86
      %p88 = scmp.le.s32.totalorder 1, %s10
      %p89 = scmp.lt.s32.totalorder %s10, 3
      %p90 = pnand %p88, %p89
      %p91 = pneg %p90
      // Predicated region
      $region9: #{tpu_custom_call.1} parent=5 // pred_check
        _
      $region10: #{tpu_custom_call.1} parent=5 // pred_check_branch
        %93 = sbr.rel (%p90) target = $region12
      $region11: #{tpu_custom_call.1} parent=5 // pred_region
        %s94 = ssub.s32 %s10, 1
      $region12: #{tpu_custom_call.1} parent=5 // pred_fallthru
        _
      %p95 = scmp.lt.s32.totalorder %s10, 2
      // Predicated region
      $region13: #{tpu_custom_call.1} parent=5 // pred_check
        %p96 = pneg %p95
      $region14: #{tpu_custom_call.1} parent=5 // pred_check_branch
        %98 = sbr.rel (%p96) target = $region16
      $region15: #{tpu_custom_call.1} parent=5 // pred_region
        // Predicated region
        $region17: #{tpu_custom_call.1} parent=15 // pred_check
          %p99 = pneg %p48
        $region18: #{tpu_custom_call.1} parent=15 // pred_check_branch
          %101 = sbr.rel (%p99) target = $region20
        $region19: #{tpu_custom_call.1} parent=15 // pred_region
          %s102 = sand.u32 %s38, 1
          %s103 = scalar_lea.sflag [#allocation4], %s102
          %s104 = sand.u32 %s38, 1
          %s105 = smul.addr %s104, 8
          %s106 = scalar_lea.vmem [#allocation3], %s105
          %s107 = sadd.s32 %s17, %s18
          %p108 = scmp.lt.s32.totalorder %s107, 0
          %s109 = scalar_select %p108, %s107, 0
          %s111 = ssub.s32 128, 128
          %112 = vsyncadd %s103, %s111
          %s113 = smul.addr %s109, 128
          %s114 = scalar_lea.hbm %s0, %s113
          %s116 = sshll.u32 %s106, 4
          %s117 = int_to_ptr.vmem [resolvable:$true] %s116
          %119 = dma.hbm_to_vmem [thread:$0]  %s114, 128, %s117, %s103
        $region20: #{tpu_custom_call.1} parent=15 // pred_fallthru
          _
      $region16: #{tpu_custom_call.1} parent=5 // pred_fallthru
        _
      %p120 = scmp.le.s32.totalorder 1, %s10
      %p121 = scmp.lt.s32.totalorder %s10, 3
      %p122 = pnand %p120, %p121
      %p123 = pneg %p122
      // Predicated region
      $region21: #{tpu_custom_call.1} parent=5 // pred_check
        _
      $region22: #{tpu_custom_call.1} parent=5 // pred_check_branch
        %125 = sbr.rel (%p122) target = $region24
      $region23: #{tpu_custom_call.1} parent=5 // pred_region
        %s126 = ssub.s32 %s10, 1
        %s127 = sand.u32 %s41, 1
        %s128 = scalar_lea.sflag [#allocation4], %s127
        %s129 = sand.u32 %s41, 1
        %s130 = smul.addr %s129, 8
        %s131 = scalar_lea.vmem [#allocation3], %s130
        // Predicated region
        $region25: #{tpu_custom_call.1} parent=23 // pred_check
          %p132 = pneg %p54
        $region26: #{tpu_custom_call.1} parent=23 // pred_check_branch
          %134 = sbr.rel (%p132) target = $region28
        $region27: #{tpu_custom_call.1} parent=23 // pred_region
          %135 = dma.done %s128, 128
        $region28: #{tpu_custom_call.1} parent=23 // pred_fallthru
          _
        %s136 = sand.u32 %s41, 1
        %s137 = scalar_lea.sflag [#allocation4], %s136
        %s138 = sand.u32 %s41, 1
        %s139 = smul.addr %s138, 8
        %s140 = scalar_lea.vmem [#allocation3], %s139
        %p141 = pneg %p54
        %p142 = pneg %p51
        %p143 = pneg %p80
        %p144 = pneg %p77
        %p145 = scmp.lt.s32.totalorder %s19, 1
        %s146 = scalar_select %p145, %s19, 1
        %s147 = scalar_lea.vmem %s1, %s146
        %s148 = sadd.s32 %s19, %s20
        %p149 = scmp.lt.s32.totalorder %s148, 0
        %s150 = scalar_select %p149, %s148, 0
        %p151 = scmp.lt.s32.totalorder %s19, 1
        %s152 = scalar_select %p151, %s19, 1
        %s153 = scalar_lea.vmem %s1, %s152
        %s154 = sadd.s32 %s19, %s20
        %p155 = scmp.eq.s32.totalorder %s20, 0
        // Predicated region
        $region29: #{tpu_custom_call.1} parent=23 // pred_check
          %p156 = pneg %p155
        $region30: #{tpu_custom_call.1} parent=23 // pred_check_branch
          %158 = sbr.rel (%p156) target = $region32
        $region31: #{tpu_custom_call.1} parent=23 // pred_region
          %vm159 = vcmask 0
          %160 = vst.msk [vmem:[#allocation2] sm:$0x1] %vm159, 0.0
        $region32: #{tpu_custom_call.1} parent=23 // pred_fallthru
          _
        %v161 = vld [vmem:[%s131] sm:$0xff]
        %vm162 = vcmask 506880
        %v163 = vsel %vm162, %v161, -inf
        %164 = vmax.xlane.f32.xlu0 %v163
        %v165 = vpop.xlane.xlu0 %164
        %v166 = vsub.f32 %v161, %v165
        %v167 = vmul.f32 %v166, 1.442695
        %v168 = vpow.pop %v167
        %v169 = vsel %vm162, %v168, 0.0
        %170 = vadd.xlane.f32.xlu0 %v169
        %v171 = vpop.xlane.xlu0 %170
        %v172 = vrcp.pop %v171
        %v173 = vlog2.pop %v171
        %v174 = vmul.f32 %v173, 0.6931472
        %vm175 = vcmp.eq.f32.partialorder %v168, 0.0
        %v176 = vsub.f32 %v166, %v174
        %v177 = vsel %vm175, -13.815511, %v176
        %v178 = vmul.f32 %v168, %v172
        %v179 = vsel %vm175, 1e-06, %v178
        %181 = vrot.lane.b32.xlu0 %v179, 97
        %v182 = vpop.permute.xlu0 %181
        %v184 = vmul.f32 %v177, %v182
        %185 = vrot.lane.b32.xlu0 %v179, 31
        %v186 = vpop.permute.xlu0 %185
        %v188 = vmul.f32 %v177, %v186
        %190 = vrot.lane.b32.xlu0 %v188, 97
        %v191 = vpop.permute.xlu0 %190
        %v193 = vadd.f32 %v184, %v191
        %vm194 = vcmask 252928
        %v195 = vsel %vm194, %v193, 0.0
        %196 = vadd.xlane.f32.xlu0 %v195
        %v197 = vpop.xlane.xlu0 %196
        %p198 = scmp.lt.s32.totalorder %s154, 1
        // Predicated region
        $region33: #{tpu_custom_call.1} parent=23 // pred_check
          %p199 = pneg %p198
        $region34: #{tpu_custom_call.1} parent=23 // pred_check_branch
          %201 = sbr.rel (%p199) target = $region36
        $region35: #{tpu_custom_call.1} parent=23 // pred_region
          %v202 = vld [vmem:[#allocation2] sm:$0x1]
          %v203 = vrot.slane %v197, 4
          %v204 = vadd.f32 %v197, %v203
          %v205 = vrot.slane %v204, 2
          %v206 = vadd.f32 %v204, %v205
          %v207 = vrot.slane %v206, 1
          %v208 = vadd.f32 %v206, %v207
          %v209 = vadd.f32 %v202, %v208
          %vm210 = vcmask 0
          %211 = vst.msk [vmem:[#allocation2] sm:$0x1] %vm210, %v209
        $region36: #{tpu_custom_call.1} parent=23 // pred_fallthru
          _
        %p212 = scmp.ge.s32.totalorder %s154, 1
        // Predicated region
        $region37: #{tpu_custom_call.1} parent=23 // pred_check
          %p213 = pneg %p212
        $region38: #{tpu_custom_call.1} parent=23 // pred_check_branch
          %215 = sbr.rel (%p213) target = $region40
        $region39: #{tpu_custom_call.1} parent=23 // pred_region
          %s216 = smul.u32 %s154, 8
          %v217 = vlaneseq
          %v218 = vshrl.u32 %v217, 7
          %v219 = vstv %s216
          %v220 = vadd.s32 %v219, %v218
          %vm221 = vcmp.lt.s32.totalorder %v220, 8
          %v222 = vsel %vm221, %v197, 0.0
          %v223 = vld [vmem:[#allocation2] sm:$0x1]
          %v224 = vrot.slane %v222, 4
          %v225 = vadd.f32 %v222, %v224
          %v226 = vrot.slane %v225, 2
          %v227 = vadd.f32 %v225, %v226
          %v228 = vrot.slane %v227, 1
          %v229 = vadd.f32 %v227, %v228
          %v230 = vadd.f32 %v223, %v229
          %vm231 = vcmask 0
          %232 = vst.msk [vmem:[#allocation2] sm:$0x1] %vm231, %v230
        $region40: #{tpu_custom_call.1} parent=23 // pred_fallthru
          _
        // Predicated region
        $region41: #{tpu_custom_call.1} parent=23 // pred_check
          %p233 = pneg %p155
        $region42: #{tpu_custom_call.1} parent=23 // pred_check_branch
          %235 = sbr.rel (%p233) target = $region44
        $region43: #{tpu_custom_call.1} parent=23 // pred_region
          %v236 = vld [vmem:[#allocation2] sm:$0x1]
          %v237 = vmul.f32 %v236, -0.0625
          %vm238 = vcmask 0
          %239 = vst.msk [vmem:[%s153] sm:$0x1] %vm238, %v237
        $region44: #{tpu_custom_call.1} parent=23 // pred_fallthru
          _
        %p240 = scmp.lt.s32.totalorder %s19, 1
        %s241 = scalar_select %p240, %s19, 1
        %s242 = scalar_lea.vmem %s1, %s241
        // Predicated region
        $region45: #{tpu_custom_call.1} parent=23 // pred_check
          %p243 = pneg %p77
        $region46: #{tpu_custom_call.1} parent=23 // pred_check_branch
          %245 = sbr.rel (%p243) target = $region48
        $region47: #{tpu_custom_call.1} parent=23 // pred_region
          _
        $region48: #{tpu_custom_call.1} parent=23 // pred_fallthru
          _
      $region24: #{tpu_custom_call.1} parent=5 // pred_fallthru
        _
      %p246 = scmp.le.s32.totalorder 2, %s10
      // Predicated region
      $region49: #{tpu_custom_call.1} parent=5 // pred_check
        %p247 = pneg %p246
      $region50: #{tpu_custom_call.1} parent=5 // pred_check_branch
        %249 = sbr.rel (%p247) target = $region52
      $region51: #{tpu_custom_call.1} parent=5 // pred_region
        %s250 = ssub.s32 %s10, 2
        // Predicated region
        $region53: #{tpu_custom_call.1} parent=51 // pred_check
          %p251 = pneg %p83
        $region54: #{tpu_custom_call.1} parent=51 // pred_check_branch
          %253 = sbr.rel (%p251) target = $region56
        $region55: #{tpu_custom_call.1} parent=51 // pred_region
          %p254 = scmp.lt.s32.totalorder %s21, 1
          %s255 = scalar_select %p254, %s21, 1
          %s256 = scalar_lea.vmem %s1, %s255
        $region56: #{tpu_custom_call.1} parent=51 // pred_fallthru
          _
      $region52: #{tpu_custom_call.1} parent=5 // pred_fallthru
        _
    $region6: #{tpu_custom_call.1} parent=1 // loop_footer
      %s14 = sadd.s32 1, %s10
    $region7: #{tpu_custom_call.1} parent=1 // loop_footer_branch
      %9 = sbr.rel target = $region3
    $region8: #{tpu_custom_call.1} parent=1 // loop_exit
      _
    %257 = vsyncpa [#allocation4], 1
    %s258 = scalar_lea.sflag [#allocation4], 1
    %259 = vsyncpa %s258, 1

</llo_original>
